<compile_context>
chip_gen: v7x
topology: tpu7x:2x2x1
jax: 0.10.0
libtpu: 0.0.40
codegen_flags: <defaults>
</compile_context>

<pallas_src>
import functools

import jax
import jax.numpy as jnp
from jax import lax
from jax.experimental import pallas as pl
from jax.experimental.pallas import tpu as pltpu

_EPS = 1e-12           # matches F.normalize default eps
_EPS_SQ = _EPS * _EPS  # max(sqrt(s), eps) == sqrt(max(s, eps^2))
_NEG = -1e30           # "minus infinity" for padded class columns (exp -> 0)


def _logitnorm_kernel(x_ref, wt_ref, labels_ref, logits_ref, loss_ref, *,
                      margin, num_classes, true_batch, block_b):
    x = x_ref[...]                       # (Bt, D)  f32
    wt = wt_ref[...]                     # (D, Cp)  f32/bf16, zero-padded columns

    # F.normalize(x, p=2, dim=1) via rsqrt (EUP) instead of sqrt + divide.
    xn = x * lax.rsqrt(jnp.maximum(jnp.sum(x * x, axis=1, keepdims=True), _EPS_SQ))

    # cos_theta = x_n @ w_n.T; weight already normalized/transposed/padded.
    # Inputs cast to the (possibly bf16) weight dtype for the MXU, f32 accumulate.
    cos = jnp.dot(xn.astype(wt.dtype), wt, preferred_element_type=jnp.float32)
    cos = jnp.clip(cos, -1.0, 1.0)

    bt, cp = cos.shape
    col = lax.broadcasted_iota(jnp.int32, (bt, cp), 1)
    if num_classes < cp:                 # mask padded class columns
        cos = jnp.where(col < num_classes, cos, _NEG)

    # softmax(dim=1) followed by L2 renorm; the softmax denominator cancels:
    #   softmax(cos) / ||softmax(cos)||_2 == e / ||e||_2 with e = exp(cos - m)
    m = jnp.max(cos, axis=1, keepdims=True)        # (Bt, 1)
    e = jnp.exp(cos - m)                           # (Bt, Cp); 0 on padded cols
    sum_e = jnp.sum(e, axis=1, keepdims=True)      # (Bt, 1), reused for the LSE
    logits_ref[...] = e * lax.rsqrt(jnp.sum(e * e, axis=1, keepdims=True))

    # ---- loss path ----
    labels = labels_ref[...]                       # (Bt, 1) int32
    onehot = (col == labels).astype(jnp.float32)   # (Bt, Cp)
    target = jnp.sum(cos * onehot, axis=1, keepdims=True)   # cos at label, (Bt, 1)

    if margin == 1.0:
        # cos(1 * acos(t)) == t on the clamped domain -> reuse m / sum_e.
        per_row = target - (m + jnp.log(sum_e))
    else:
        modified = jnp.cos(margin * jnp.arccos(target))      # (Bt, 1)
        # Incremental LSE of cos with the label column replaced by `modified`
        # (no rebuilt (Bt, Cp) matrix, no second full exp pass).
        mm = jnp.maximum(m, modified)
        sum_mod = ((sum_e - jnp.exp(target - m)) * jnp.exp(m - mm)
                   + jnp.exp(modified - mm))
        per_row = modified - (mm + jnp.log(sum_mod))

    # mask batch-padding rows out of the per-block partial loss sum
    row = pl.program_id(0) * block_b + lax.broadcasted_iota(jnp.int32, (bt, 1), 0)
    per_row = jnp.where(row < true_batch, per_row, 0.0)
    loss_ref[0, 0] = -jnp.sum(per_row)


def _round_up(n, k):
    return ((n + k - 1) // k) * k


def logitnorm_forward(x, weight, labels, margin=1.0, block_b=256,
                      use_bf16_matmul=True):
    """Returns (logits, loss) matching the PyTorch module's forward with labels."""
    B, D = x.shape
    C, _ = weight.shape

    # ---- tiling / padding decisions ----
    block_b = max(8, (int(block_b) // 8) * 8)            # sublane multiple
    block_b = min(block_b, _round_up(B, 8))
    if _round_up(B, block_b) // block_b < 2 and block_b % 16 == 0:
        block_b //= 2          # keep >= 2 grid steps so both v7x TCs get work
    B_pad = _round_up(B, block_b)
    num_blocks = B_pad // block_b
    C_pad = max(128, _round_up(C, 128))                   # lane-dense logits

    # ---- batch-independent preprocessing hoisted out of the kernel ----
    x_pad = jnp.pad(x.astype(jnp.float32), ((0, B_pad - B), (0, 0)))
    labels_pad = jnp.pad(labels.astype(jnp.int32), (0, B_pad - B)).reshape(B_pad, 1)

    wn = weight.astype(jnp.float32)
    wn = wn * lax.rsqrt(jnp.maximum(jnp.sum(wn * wn, axis=1, keepdims=True), _EPS_SQ))
    wt = jnp.pad(wn.T, ((0, 0), (0, C_pad - C)))          # (D, C_pad), zero cols
    if use_bf16_matmul:
        wt = wt.astype(jnp.bfloat16)   # MXU-native on v6e/v7x; halves weight bytes

    kernel = functools.partial(
        _logitnorm_kernel, margin=float(margin), num_classes=C,
        true_batch=B, block_b=block_b)

    # ---- explicit VMEM budget (headroom, capped at v7x physical 64 MiB) ----
    wt_bytes = D * C_pad * wt.dtype.itemsize
    vmem_est = (2 * block_b * D * 4          # x, double-buffered
                + 2 * wt_bytes               # weight (worst case double-buffered)
                + 2 * block_b * 128 * 4      # labels (lane-padded)
                + 2 * block_b * C_pad * 4    # logits out, double-buffered
                + 6 * block_b * C_pad * 4)   # in-kernel temporaries (cos/e/...)
    vmem_limit = int(max(32 << 20, min(vmem_est + (4 << 20), 64 << 20)))

    cost = pl.CostEstimate(
        flops=2 * B_pad * C_pad * D,
        transcendentals=B_pad * C_pad + 8 * B_pad,
        bytes_accessed=(4 * (B_pad * D + B_pad * C_pad + B_pad)
                        + num_blocks * wt_bytes),
    )

    def call(single_buffer_weight):
        wt_spec_kwargs = {}
        if single_buffer_weight:
            # weight block index never changes -> one pipeline buffer is enough
            wt_spec_kwargs["pipeline_mode"] = pl.Buffered(buffer_count=1)
        return pl.pallas_call(
            kernel,
            out_shape=(
                jax.ShapeDtypeStruct((B_pad, C_pad), jnp.float32),
                jax.ShapeDtypeStruct((num_blocks, 1), jnp.float32),
            ),
            grid=(num_blocks,),
            in_specs=[
                pl.BlockSpec((block_b, D), lambda i: (i, 0)),
                pl.BlockSpec((D, C_pad), lambda i: (0, 0), **wt_spec_kwargs),
                pl.BlockSpec((block_b, 1), lambda i: (i, 0)),
            ],
            out_specs=(
                pl.BlockSpec((block_b, C_pad), lambda i: (i, 0)),
                pl.BlockSpec((1, 1), lambda i: (i, 0), memory_space=pltpu.SMEM),
            ),
            compiler_params=pltpu.CompilerParams(
                dimension_semantics=("parallel",),
                vmem_limit_bytes=vmem_limit,
            ),
            cost_estimate=cost,
        )(x_pad, wt, labels_pad)

    try:
        logits_pad, loss_partials = call(True)
    except Exception:
        # pl.Buffered(1) not supported by this JAX build -> default buffering.
        logits_pad, loss_partials = call(False)

    logits = logits_pad[:B, :C]
    loss = jnp.sum(loss_partials) / jnp.float32(B)
    return logits, loss


def _xavier_uniform(key, shape):
    fan_out, fan_in = shape  # (num_classes, feat_dim)
    bound = jnp.sqrt(6.0 / (fan_in + fan_out))
    return jax.random.uniform(key, shape, jnp.float32, -bound, bound)


def _ref_forward(x, weight, labels, margin=1.0):
    # pure-JAX reference mirroring the PyTorch code exactly (f32 throughout)
    eps = 1e-12
    xn = x / jnp.maximum(jnp.linalg.norm(x, axis=1, keepdims=True), eps)
    wn = weight / jnp.maximum(jnp.linalg.norm(weight, axis=1, keepdims=True), eps)
    cos = jnp.clip(xn @ wn.T, -1.0, 1.0)
    sm = jax.nn.softmax(cos, axis=1)
    logits = sm / jnp.linalg.norm(sm, axis=1, keepdims=True)
    rows = jnp.arange(cos.shape[0])
    target = cos[rows, labels]
    modified = jnp.cos(margin * jnp.arccos(target))
    cos_mod = cos.at[rows, labels].set(modified)
    log_probs = jax.nn.log_softmax(cos_mod, axis=1)
    loss = -jnp.mean(log_probs[rows, labels])
    return logits, loss


if __name__ == "__main__":
    # small shapes consistent with the module: feat_dim=32, num_classes=10, batch=8
    B, D, C = 8, 32, 10
    key = jax.random.PRNGKey(0)
    kx, kw, kl = jax.random.split(key, 3)

    x = jax.random.normal(kx, (B, D), dtype=jnp.float32)
    weight = _xavier_uniform(kw, (C, D))
    labels = jax.random.randint(kl, (B,), 0, C, dtype=jnp.int32)

    ok = True
    for margin in (1.0, 1.35):
        ref_logits, ref_loss = _ref_forward(x, weight, labels, margin=margin)

        # f32 matmul path: tight tolerance
        logits, loss = logitnorm_forward(x, weight, labels, margin=margin,
                                         use_bf16_matmul=False)
        jax.block_until_ready((logits, loss))
        ok &= bool(jnp.allclose(logits, ref_logits, atol=1e-4, rtol=1e-4))
        ok &= bool(jnp.allclose(loss, ref_loss, atol=1e-4, rtol=1e-4))

        # bf16 MXU-input path (default): looser tolerance
        logits_b, loss_b = logitnorm_forward(x, weight, labels, margin=margin,
                                             use_bf16_matmul=True)
        jax.block_until_ready((logits_b, loss_b))
        ok &= bool(jnp.allclose(logits_b, ref_logits, atol=5e-2, rtol=5e-2))
        ok &= bool(jnp.allclose(loss_b, ref_loss, atol=5e-2, rtol=5e-2))

    assert ok
    print("KERNEL_OK")
</pallas_src>

<mosaic_0001>
module attributes {stable_mosaic.version = 11 : i64} {
  func.func @_logitnorm_kernel(%arg0: i32, %arg1: memref<8x32xf32, #tpu.memory_space<vmem>>, %arg2: memref<32x128xf32, #tpu.memory_space<vmem>>, %arg3: memref<8x1xi32, #tpu.memory_space<vmem>>, %arg4: memref<8x128xf32, #tpu.memory_space<vmem>>, %arg5: memref<1x1xf32, #tpu.memory_space<smem>>) attributes {dimension_semantics = [#tpu.dimension_semantics<parallel>], iteration_bounds = array<i64: 1>, scalar_prefetch = 0 : i64, scratch_operands = 0 : i64, tpu.core_type = #tpu.core_type<tc>, window_params = [{transform_indices = @transform_0, window_bounds = array<i64: 8, 32>}, {pipeline_mode = #tpu.pipeline_mode<synchronous>, transform_indices = @transform_1, window_bounds = array<i64: 32, 128>}, {transform_indices = @transform_2, window_bounds = array<i64: 8, 1>}, {transform_indices = @transform_3, window_bounds = array<i64: 8, 128>}, {transform_indices = @transform_4, window_bounds = array<i64: 1, 1>}]} {
    %c0 = arith.constant 0 : index
    %c0_0 = arith.constant 0 : index
    %0 = vector.load %arg1[%c0, %c0_0] : memref<8x32xf32, #tpu.memory_space<vmem>>, vector<8x32xf32>
    %c0_1 = arith.constant 0 : index
    %c0_2 = arith.constant 0 : index
    %1 = vector.load %arg2[%c0_1, %c0_2] : memref<32x128xf32, #tpu.memory_space<vmem>>, vector<32x128xf32>
    %2 = arith.mulf %0, %0 : vector<8x32xf32>
    %cst = arith.constant dense<0.000000e+00> : vector<8xf32>
    %3 = vector.multi_reduction <add>, %2, %cst [1] : vector<8x32xf32> to vector<8xf32>
    %4 = vector.shape_cast %3 : vector<8xf32> to vector<8x1xf32>
    %cst_3 = arith.constant 1.000000e-24 : f32
    %5 = vector.broadcast %cst_3 : f32 to vector<8x1xf32>
    %6 = arith.maximumf %4, %5 : vector<8x1xf32>
    %7 = math.rsqrt %6 : vector<8x1xf32>
    %8 = vector.broadcast %7 : vector<8x1xf32> to vector<8x32xf32>
    %9 = arith.mulf %0, %8 : vector<8x32xf32>
    %cst_4 = arith.constant dense<0.000000e+00> : vector<8x128xf32>
    %10 = tpu.matmul %9, %1, %cst_4 {dimension_numbers = #tpu.dot_dimension_numbers<[1], [0], [0], [1], [0, 0, 1, 1], [], []>} : vector<8x32xf32>, vector<32x128xf32>, vector<8x128xf32> -> vector<8x128xf32>
    %cst_5 = arith.constant -1.000000e+00 : f32
    %cst_6 = arith.constant 1.000000e+00 : f32
    %11 = vector.broadcast %cst_5 : f32 to vector<8x128xf32>
    %12 = arith.maximumf %11, %10 : vector<8x128xf32>
    %13 = vector.broadcast %cst_6 : f32 to vector<8x128xf32>
    %14 = arith.minimumf %13, %12 : vector<8x128xf32>
    %15 = tpu.iota {dimensions = array<i32: 1>} : vector<8x128xi32>
    %c10_i32 = arith.constant 10 : i32
    %16 = vector.broadcast %c10_i32 : i32 to vector<8x128xi32>
    %17 = arith.cmpi slt, %15, %16 : vector<8x128xi32>
    %cst_7 = arith.constant -1.000000e+30 : f32
    %18 = vector.broadcast %cst_7 : f32 to vector<8x128xf32>
    %19 = arith.select %17, %14, %18 : vector<8x128xi1>, vector<8x128xf32>
    %cst_8 = arith.constant dense<0xFF800000> : vector<8xf32>
    %20 = vector.multi_reduction <maximumf>, %19, %cst_8 [1] : vector<8x128xf32> to vector<8xf32>
    %21 = vector.shape_cast %20 : vector<8xf32> to vector<8x1xf32>
    %22 = vector.broadcast %21 : vector<8x1xf32> to vector<8x128xf32>
    %23 = arith.subf %19, %22 : vector<8x128xf32>
    %24 = math.exp %23 : vector<8x128xf32>
    %cst_9 = arith.constant dense<0.000000e+00> : vector<8xf32>
    %25 = vector.multi_reduction <add>, %24, %cst_9 [1] : vector<8x128xf32> to vector<8xf32>
    %26 = vector.shape_cast %25 : vector<8xf32> to vector<8x1xf32>
    %27 = arith.mulf %24, %24 : vector<8x128xf32>
    %cst_10 = arith.constant dense<0.000000e+00> : vector<8xf32>
    %28 = vector.multi_reduction <add>, %27, %cst_10 [1] : vector<8x128xf32> to vector<8xf32>
    %29 = vector.shape_cast %28 : vector<8xf32> to vector<8x1xf32>
    %30 = math.rsqrt %29 : vector<8x1xf32>
    %31 = vector.broadcast %30 : vector<8x1xf32> to vector<8x128xf32>
    %32 = arith.mulf %24, %31 : vector<8x128xf32>
    %c0_11 = arith.constant 0 : index
    %c0_12 = arith.constant 0 : index
    %33 = vector.load %arg4[%c0_11, %c0_12] : memref<8x128xf32, #tpu.memory_space<vmem>>, vector<8x128xf32>
    tpu.vector_store %arg4[%c0_11, %c0_12], %32 {strides = array<i32>} : memref<8x128xf32, #tpu.memory_space<vmem>>, vector<8x128xf32>,
    %c0_13 = arith.constant 0 : index
    %c0_14 = arith.constant 0 : index
    %34 = vector.load %arg3[%c0_13, %c0_14] : memref<8x1xi32, #tpu.memory_space<vmem>>, vector<8x1xi32>
    %35 = vector.broadcast %34 : vector<8x1xi32> to vector<8x128xi32>
    %36 = arith.cmpi eq, %15, %35 : vector<8x128xi32>
    %37 = arith.extui %36 : vector<8x128xi1> to vector<8x128xi32>
    %38 = arith.sitofp %37 : vector<8x128xi32> to vector<8x128xf32>
    %39 = arith.mulf %19, %38 : vector<8x128xf32>
    %cst_15 = arith.constant dense<0.000000e+00> : vector<8xf32>
    %40 = vector.multi_reduction <add>, %39, %cst_15 [1] : vector<8x128xf32> to vector<8xf32>
    %41 = vector.shape_cast %40 : vector<8xf32> to vector<8x1xf32>
    %42 = math.log %26 : vector<8x1xf32>
    %43 = arith.addf %21, %42 : vector<8x1xf32>
    %44 = arith.subf %41, %43 : vector<8x1xf32>
    %c8_i32 = arith.constant 8 : i32
    %45 = arith.muli %arg0, %c8_i32 : i32
    %46 = tpu.iota {dimensions = array<i32: 0>} : vector<8x1xi32>
    %47 = vector.broadcast %45 : i32 to vector<8x1xi32>
    %48 = arith.addi %47, %46 : vector<8x1xi32>
    %c8_i32_16 = arith.constant 8 : i32
    %49 = vector.broadcast %c8_i32_16 : i32 to vector<8x1xi32>
    %50 = arith.cmpi slt, %48, %49 : vector<8x1xi32>
    %cst_17 = arith.constant 0.000000e+00 : f32
    %51 = vector.broadcast %cst_17 : f32 to vector<8x1xf32>
    %52 = arith.select %50, %44, %51 : vector<8x1xi1>, vector<8x1xf32>
    %53 = vector.shape_cast %52 : vector<8x1xf32> to vector<1x8x1xf32>
    %cst_18 = arith.constant dense<0.000000e+00> : vector<1xf32>
    %54 = vector.multi_reduction <add>, %53, %cst_18 [1, 2] : vector<1x8x1xf32> to vector<1xf32>
    %55 = vector.shape_cast %54 : vector<1xf32> to vector<1x1x1xf32>
    %56 = vector.extract %55[0, 0, 0] : f32 from vector<1x1x1xf32>
    %cst_19 = arith.constant 0.000000e+00 : f32
    %57 = arith.subf %cst_19, %56 : f32
    %c0_20 = arith.constant 0 : index
    %c0_21 = arith.constant 0 : index
    %58 = memref.load %arg5[%c0_20, %c0_21] : memref<1x1xf32, #tpu.memory_space<smem>>
    memref.store %57, %arg5[%c0_20, %c0_21] : memref<1x1xf32, #tpu.memory_space<smem>>
    return
  }
  func.func @transform_0(%arg0: i32) -> (i32, i32) {
    %c0_i32 = arith.constant 0 : i32
    %c0_i32_0 = arith.constant 0 : i32
    return %arg0, %c0_i32 : i32, i32
  }
  func.func @transform_1(%arg0: i32) -> (i32, i32) {
    %c0_i32 = arith.constant 0 : i32
    %c0_i32_0 = arith.constant 0 : i32
    %c0_i32_1 = arith.constant 0 : i32
    return %c0_i32, %c0_i32_0 : i32, i32
  }
  func.func @transform_2(%arg0: i32) -> (i32, i32) {
    %c0_i32 = arith.constant 0 : i32
    %c0_i32_0 = arith.constant 0 : i32
    return %arg0, %c0_i32 : i32, i32
  }
  func.func @transform_3(%arg0: i32) -> (i32, i32) {
    %c0_i32 = arith.constant 0 : i32
    %c0_i32_0 = arith.constant 0 : i32
    return %arg0, %c0_i32 : i32, i32
  }
  func.func @transform_4(%arg0: i32) -> (i32, i32) {
    %c0_i32 = arith.constant 0 : i32
    %c0_i32_0 = arith.constant 0 : i32
    return %arg0, %c0_i32 : i32, i32
  }
}

module attributes {stable_mosaic.version = 11 : i64} {
  func.func @_logitnorm_kernel(%arg0: i32, %arg1: memref<8x32xf32, #tpu.memory_space<vmem>>, %arg2: memref<32x128xf32, #tpu.memory_space<vmem>>, %arg3: memref<8x1xi32, #tpu.memory_space<vmem>>, %arg4: memref<8x128xf32, #tpu.memory_space<vmem>>, %arg5: memref<1x1xf32, #tpu.memory_space<smem>>) attributes {dimension_semantics = [#tpu.dimension_semantics<parallel>], iteration_bounds = array<i64: 1>, scalar_prefetch = 0 : i64, scratch_operands = 0 : i64, tpu.core_type = #tpu.core_type<tc>, window_params = [{transform_indices = @transform_0, window_bounds = array<i64: 8, 32>}, {pipeline_mode = #tpu.pipeline_mode<synchronous>, transform_indices = @transform_1, window_bounds = array<i64: 32, 128>}, {transform_indices = @transform_2, window_bounds = array<i64: 8, 1>}, {transform_indices = @transform_3, window_bounds = array<i64: 8, 128>}, {transform_indices = @transform_4, window_bounds = array<i64: 1, 1>}]} {
    %c0 = arith.constant 0 : index
    %c0_0 = arith.constant 0 : index
    %0 = vector.load %arg1[%c0, %c0_0] : memref<8x32xf32, #tpu.memory_space<vmem>>, vector<8x32xf32>
    %c0_1 = arith.constant 0 : index
    %c0_2 = arith.constant 0 : index
    %1 = vector.load %arg2[%c0_1, %c0_2] : memref<32x128xf32, #tpu.memory_space<vmem>>, vector<32x128xf32>
    %2 = arith.mulf %0, %0 : vector<8x32xf32>
    %cst = arith.constant dense<0.000000e+00> : vector<8xf32>
    %3 = vector.multi_reduction <add>, %2, %cst [1] : vector<8x32xf32> to vector<8xf32>
    %4 = vector.shape_cast %3 : vector<8xf32> to vector<8x1xf32>
    %cst_3 = arith.constant 1.000000e-24 : f32
    %5 = vector.broadcast %cst_3 : f32 to vector<8x1xf32>
    %6 = arith.maximumf %4, %5 : vector<8x1xf32>
    %7 = math.rsqrt %6 : vector<8x1xf32>
    %8 = vector.broadcast %7 : vector<8x1xf32> to vector<8x32xf32>
    %9 = arith.mulf %0, %8 : vector<8x32xf32>
    %cst_4 = arith.constant dense<0.000000e+00> : vector<8x128xf32>
    %10 = tpu.matmul %9, %1, %cst_4 {dimension_numbers = #tpu.dot_dimension_numbers<[1], [0], [0], [1], [0, 0, 1, 1], [], []>} : vector<8x32xf32>, vector<32x128xf32>, vector<8x128xf32> -> vector<8x128xf32>
    %cst_5 = arith.constant -1.000000e+00 : f32
    %cst_6 = arith.constant 1.000000e+00 : f32
    %11 = vector.broadcast %cst_5 : f32 to vector<8x128xf32>
    %12 = arith.maximumf %11, %10 : vector<8x128xf32>
    %13 = vector.broadcast %cst_6 : f32 to vector<8x128xf32>
    %14 = arith.minimumf %13, %12 : vector<8x128xf32>
    %15 = tpu.iota {dimensions = array<i32: 1>} : vector<8x128xi32>
    %c10_i32 = arith.constant 10 : i32
    %16 = vector.broadcast %c10_i32 : i32 to vector<8x128xi32>
    %17 = arith.cmpi slt, %15, %16 : vector<8x128xi32>
    %cst_7 = arith.constant -1.000000e+30 : f32
    %18 = vector.broadcast %cst_7 : f32 to vector<8x128xf32>
    %19 = arith.select %17, %14, %18 : vector<8x128xi1>, vector<8x128xf32>
    %cst_8 = arith.constant dense<0xFF800000> : vector<8xf32>
    %20 = vector.multi_reduction <maximumf>, %19, %cst_8 [1] : vector<8x128xf32> to vector<8xf32>
    %21 = vector.shape_cast %20 : vector<8xf32> to vector<8x1xf32>
    %22 = vector.broadcast %21 : vector<8x1xf32> to vector<8x128xf32>
    %23 = arith.subf %19, %22 : vector<8x128xf32>
    %24 = math.exp %23 : vector<8x128xf32>
    %cst_9 = arith.constant dense<0.000000e+00> : vector<8xf32>
    %25 = vector.multi_reduction <add>, %24, %cst_9 [1] : vector<8x128xf32> to vector<8xf32>
    %26 = vector.shape_cast %25 : vector<8xf32> to vector<8x1xf32>
    %27 = arith.mulf %24, %24 : vector<8x128xf32>
    %cst_10 = arith.constant dense<0.000000e+00> : vector<8xf32>
    %28 = vector.multi_reduction <add>, %27, %cst_10 [1] : vector<8x128xf32> to vector<8xf32>
    %29 = vector.shape_cast %28 : vector<8xf32> to vector<8x1xf32>
    %30 = math.rsqrt %29 : vector<8x1xf32>
    %31 = vector.broadcast %30 : vector<8x1xf32> to vector<8x128xf32>
    %32 = arith.mulf %24, %31 : vector<8x128xf32>
    %c0_11 = arith.constant 0 : index
    %c0_12 = arith.constant 0 : index
    %33 = vector.load %arg4[%c0_11, %c0_12] : memref<8x128xf32, #tpu.memory_space<vmem>>, vector<8x128xf32>
    tpu.vector_store %arg4[%c0_11, %c0_12], %32 {strides = array<i32>} : memref<8x128xf32, #tpu.memory_space<vmem>>, vector<8x128xf32>,
    %c0_13 = arith.constant 0 : index
    %c0_14 = arith.constant 0 : index
    %34 = vector.load %arg3[%c0_13, %c0_14] : memref<8x1xi32, #tpu.memory_space<vmem>>, vector<8x1xi32>
    %35 = vector.broadcast %34 : vector<8x1xi32> to vector<8x128xi32>
    %36 = arith.cmpi eq, %15, %35 : vector<8x128xi32>
    %37 = arith.extui %36 : vector<8x128xi1> to vector<8x128xi32>
    %38 = arith.sitofp %37 : vector<8x128xi32> to vector<8x128xf32>
    %39 = arith.mulf %19, %38 : vector<8x128xf32>
    %cst_15 = arith.constant dense<0.000000e+00> : vector<8xf32>
    %40 = vector.multi_reduction <add>, %39, %cst_15 [1] : vector<8x128xf32> to vector<8xf32>
    %41 = vector.shape_cast %40 : vector<8xf32> to vector<8x1xf32>
    %42 = math.log %26 : vector<8x1xf32>
    %43 = arith.addf %21, %42 : vector<8x1xf32>
    %44 = arith.subf %41, %43 : vector<8x1xf32>
    %c8_i32 = arith.constant 8 : i32
    %45 = arith.muli %arg0, %c8_i32 : i32
    %46 = tpu.iota {dimensions = array<i32: 0>} : vector<8x1xi32>
    %47 = vector.broadcast %45 : i32 to vector<8x1xi32>
    %48 = arith.addi %47, %46 : vector<8x1xi32>
    %c8_i32_16 = arith.constant 8 : i32
    %49 = vector.broadcast %c8_i32_16 : i32 to vector<8x1xi32>
    %50 = arith.cmpi slt, %48, %49 : vector<8x1xi32>
    %cst_17 = arith.constant 0.000000e+00 : f32
    %51 = vector.broadcast %cst_17 : f32 to vector<8x1xf32>
    %52 = arith.select %50, %44, %51 : vector<8x1xi1>, vector<8x1xf32>
    %53 = vector.shape_cast %52 : vector<8x1xf32> to vector<1x8x1xf32>
    %cst_18 = arith.constant dense<0.000000e+00> : vector<1xf32>
    %54 = vector.multi_reduction <add>, %53, %cst_18 [1, 2] : vector<1x8x1xf32> to vector<1xf32>
    %55 = vector.shape_cast %54 : vector<1xf32> to vector<1x1x1xf32>
    %56 = vector.extract %55[0, 0, 0] : f32 from vector<1x1x1xf32>
    %cst_19 = arith.constant 0.000000e+00 : f32
    %57 = arith.subf %cst_19, %56 : f32
    %c0_20 = arith.constant 0 : index
    %c0_21 = arith.constant 0 : index
    %58 = memref.load %arg5[%c0_20, %c0_21] : memref<1x1xf32, #tpu.memory_space<smem>>
    memref.store %57, %arg5[%c0_20, %c0_21] : memref<1x1xf32, #tpu.memory_space<smem>>
    return
  }
  func.func @transform_0(%arg0: i32) -> (i32, i32) {
    %c0_i32 = arith.constant 0 : i32
    %c0_i32_0 = arith.constant 0 : i32
    return %arg0, %c0_i32 : i32, i32
  }
  func.func @transform_1(%arg0: i32) -> (i32, i32) {
    %c0_i32 = arith.constant 0 : i32
    %c0_i32_0 = arith.constant 0 : i32
    %c0_i32_1 = arith.constant 0 : i32
    return %c0_i32, %c0_i32_0 : i32, i32
  }
  func.func @transform_2(%arg0: i32) -> (i32, i32) {
    %c0_i32 = arith.constant 0 : i32
    %c0_i32_0 = arith.constant 0 : i32
    return %arg0, %c0_i32 : i32, i32
  }
  func.func @transform_3(%arg0: i32) -> (i32, i32) {
    %c0_i32 = arith.constant 0 : i32
    %c0_i32_0 = arith.constant 0 : i32
    return %arg0, %c0_i32 : i32, i32
  }
  func.func @transform_4(%arg0: i32) -> (i32, i32) {
    %c0_i32 = arith.constant 0 : i32
    %c0_i32_0 = arith.constant 0 : i32
    return %arg0, %c0_i32 : i32, i32
  }
}

</mosaic_0001>

<llo_original>
// kernel: tpu_custom_call.1
$region0: #{tpu_custom_call.1}
  #allocation0 [shape = 'u32[]', space=smem, size = 0x4, offset = 0x4, fixed_abs, tag = 'smem constant byte address 0x4 - core index']
  #allocation1 [shape = 'u32[144,128]{1,0:T(1,128)}', space=vmem, size = 0x12000, scoped, tag = 'internal scratch']
  %s0 = inlined_call_operand.vmem [shape: f32[8,32], index: 0, kind: input, shape index: {}]
  %s1 = inlined_call_operand.hbm [shape: f32[32,128], index: 1, kind: input, shape index: {}]
  %s2 = inlined_call_operand.vmem [shape: s32[8,1], index: 2, kind: input, shape index: {}]
  %s3 = inlined_call_operand.hbm [shape: f32[8,128], index: 3, kind: output, shape index: {0}]
  %s4 = inlined_call_operand.hbm [shape: f32[1,1], index: 4, kind: output, shape index: {1}]
  %5 = xla_tuple %s3, %s4
  %s6 = sld [smem:[#allocation0]]
  $region34: #{tpu_custom_call.1} parent=0
    _
  %s8 = ssub.s32 1, %s6
  %s9 = scalar_select 0, %s8, %s6
  $region1: #{tpu_custom_call.1} parent=0
    #allocation2 [shape = 'u8[16384]{0}', space=vmem, size = 0x4000, scoped, tag = 'input window, operand 1, single buffered']
    #allocation3 [shape = 's32[1]{0}', space=sflag, size = 0x4, scoped, tag = 'scoped memory for tpu_custom_call.1']
    #allocation4 [shape = 's32[1]{0}', space=sflag, size = 0x4, scoped, tag = 'scoped memory for tpu_custom_call.1']
    #allocation5 [shape = 's32[1]{0}', space=sflag, size = 0x4, scoped, tag = 'scoped memory for tpu_custom_call.1']
    #allocation6 [shape = 'u8[4096]{0}', space=vmem, size = 0x1000, scoped, tag = 'output window, operand 0, single buffered']
    #allocation7 [shape = 'u8[512]{0}', space=smem, size = 0x200, scoped, tag = 'output window, operand 1, single buffered']
    %10 = vsyncpa [#allocation3], 0
    %11 = vsyncpa [#allocation4], 0
    %12 = vsyncpa [#allocation5], 0
    // Predicated region
    $region2: #{tpu_custom_call.1} parent=1 // pred_check
      _
    $region3: #{tpu_custom_call.1} parent=1 // pred_check_branch
      %14 = sbr.rel (0) target = $region5
    $region4: #{tpu_custom_call.1} parent=1 // pred_region
      _
    $region5: #{tpu_custom_call.1} parent=1 // pred_fallthru
      _
    // Predicated region
    $region6: #{tpu_custom_call.1} parent=1 // pred_check
      _
    $region7: #{tpu_custom_call.1} parent=1 // pred_check_branch
      %16 = sbr.rel (0) target = $region9
    $region8: #{tpu_custom_call.1} parent=1 // pred_region
      %s18 = ssub.s32 512, 512
      %19 = vsyncadd [#allocation3], %s18
      %s20 = sshll.u32 [#allocation2], 4
      %s21 = int_to_ptr.vmem [resolvable:$true] %s20
      %26 = dma.hbm_to_vmem [thread:$0]  %s1, 512, %s21, [#allocation3], 128, 128, 8
    $region9: #{tpu_custom_call.1} parent=1 // pred_fallthru
      _
    // Predicated region
    $region10: #{tpu_custom_call.1} parent=1 // pred_check
      _
    $region11: #{tpu_custom_call.1} parent=1 // pred_check_branch
      %28 = sbr.rel (0) target = $region13
    $region12: #{tpu_custom_call.1} parent=1 // pred_region
      _
    $region13: #{tpu_custom_call.1} parent=1 // pred_fallthru
      _
    // Predicated region
    $region14: #{tpu_custom_call.1} parent=1 // pred_check
      _
    $region15: #{tpu_custom_call.1} parent=1 // pred_check_branch
      %30 = sbr.rel (0) target = $region17
    $region16: #{tpu_custom_call.1} parent=1 // pred_region
      %31 = dma.done [#allocation3], 512
    $region17: #{tpu_custom_call.1} parent=1 // pred_fallthru
      _
    %v32 = vld [vmem:[%s0] sm:$0xff]
    %v33 = vld [vmem:[#allocation2] sm:$0xff]
    %v34 = vld [vmem:[#allocation2 + $0x8] sm:$0xff]
    %v35 = vld [vmem:[#allocation2 + $0x10] sm:$0xff]
    %v36 = vld [vmem:[#allocation2 + $0x18] sm:$0xff]
    %v37 = vmul.f32 %v32, %v32
    %vm38 = vcmask 261120
    %v39 = vsel %vm38, %v37, 0.0
    %40 = vadd.xlane.f32.xlu0 %v39
    %v41 = vpop.xlane.xlu0 %40
    %v42 = vmax.f32 %v41, 1e-24
    %v43 = vrsqrt.pop %v42
    %v44 = vmul.f32 %v32, %v43
    %v46 = vsel %vm38, %v44, 0
    %48 = vmatprep.subr.mxu0 0.0
    %49 = vmatpush1.msra.mxu0 %v33
    %50 = vmatprep.subr.mxu0 0.0
    %51 = vmatpush1.msra.mxu0 %v34
    %52 = vmatprep.subr.mxu0 0.0
    %53 = vmatpush1.msra.mxu0 %v35
    %54 = vmatprep.subr.mxu0 0.0
    %55 = vmatpush1.msra.mxu0 %v36
    %56 = vmatprep.subr.mxu0 0.0
    %57 = vmatpush1.msra.mxu0 0.0
    %58 = vmatprep.subr.mxu0 0.0
    %59 = vmatpush1.msra.mxu0 0.0
    %60 = vmatprep.subr.mxu0 0.0
    %61 = vmatpush1.msra.mxu0 0.0
    %62 = vmatprep.subr.mxu0 0.0
    %63 = vmatpush1.msra.mxu0 0.0
    %64 = vmatprep.subr.mxu0 0.0
    %65 = vmatpush1.msra.mxu0 0.0
    %66 = vmatprep.subr.mxu0 0.0
    %67 = vmatpush1.msra.mxu0 0.0
    %68 = vmatprep.subr.mxu0 0.0
    %69 = vmatpush1.msra.mxu0 0.0
    %70 = vmatprep.subr.mxu0 0.0
    %71 = vmatpush1.msra.mxu0 0.0
    %72 = vmatprep.subr.mxu0 0.0
    %73 = vmatpush1.msra.mxu0 0.0
    %74 = vmatprep.subr.mxu0 0.0
    %75 = vmatpush1.msra.mxu0 0.0
    %76 = vmatprep.subr.mxu0 0.0
    %77 = vmatpush1.msra.mxu0 0.0
    %78 = vmatprep.subr.mxu0 0.0
    %79 = vmatpush1.msra.mxu0 0.0
    %80 = vmatprep.subr.mxu0 0.0
    %81 = vmatpush1.msra.mxu0 0.0
    %82 = vmatprep.subr.mxu0 0.0
    %83 = vmatpush1.msra.mxu0 0.0
    %84 = vmatprep.subr.mxu0 0.0
    %85 = vmatpush1.msra.mxu0 0.0
    %86 = vmatprep.subr.mxu0 0.0
    %87 = vmatpush1.msra.mxu0 0.0
    %88 = vmatprep.subr.mxu0 0.0
    %89 = vmatpush1.msra.mxu0 0.0
    %90 = vmatprep.subr.mxu0 0.0
    %91 = vmatpush1.msra.mxu0 0.0
    %92 = vmatprep.subr.mxu0 0.0
    %93 = vmatpush1.msra.mxu0 0.0
    %94 = vmatprep.subr.mxu0 0.0
    %95 = vmatpush1.msra.mxu0 0.0
    %96 = vmatprep.subr.mxu0 0.0
    %97 = vmatpush1.msra.mxu0 0.0
    %98 = vmatprep.subr.mxu0 0.0
    %99 = vmatpush1.msra.mxu0 0.0
    %100 = vmatprep.subr.mxu0 0.0
    %101 = vmatpush1.msra.mxu0 0.0
    %102 = vmatprep.subr.mxu0 0.0
    %103 = vmatpush1.msra.mxu0 0.0
    %104 = vmatprep.subr.mxu0 0.0
    %105 = vmatpush1.msra.mxu0 0.0
    %106 = vmatprep.subr.mxu0 0.0
    %107 = vmatpush1.msra.mxu0 0.0
    %108 = vmatprep.subr.mxu0 0.0
    %109 = vmatpush1.msra.mxu0 0.0
    %110 = vmatprep.subr.mxu0 0.0
    %111 = vmatpush1.msra.mxu0 0.0
    %112 = vmatprep.mubr.f32.mxu0 0.0
    %113 = vmatmul.mubr.f32.gmra.mrb[0].mxu0 %v46
    %v114 = vpop.f32.mrb[0].mxu0
    %v115 = vadd.f32 0.0, %v114
    %v116 = vpop.f32.mrb[0].mxu0
    %117 = vdwg.mxu0
    %v118 = vmax.f32 %v115, -1.0
    %v119 = vmin.f32 %v118, 1.0
    %v120 = vlaneseq
    %v121 = vand.u32 %v120, 127
    %vm122 = vcmp.lt.s32.totalorder %v121, 10
    %v123 = vsel %vm122, %v119, -1e+30
    %124 = vmax.xlane.f32.xlu0 %v123
    %v125 = vpop.xlane.xlu0 %124
    %v126 = vsub.f32 %v123, %v125
    %v127 = vmul.f32 %v126, 1.442695
    %v128 = vpow.pop %v127
    %129 = vadd.xlane.f32.xlu0 %v128
    %v130 = vpop.xlane.xlu0 %129
    %v131 = vmul.f32 %v128, %v128
    %132 = vadd.xlane.f32.xlu0 %v131
    %v133 = vpop.xlane.xlu0 %132
    %v134 = vrsqrt.pop %v133
    %v135 = vmul.f32 %v128, %v134
    %136 = vst [vmem:[#allocation6] sm:$0xff] %v135
    %v137 = vld [vmem:[%s2] sm:$0xff]
    %138 = vset.pattern.permute.xlu0 0
    %139 = vperm.xlu0 %138, %v137
    %v140 = vpop.permute.xlu0 %139
    %vm141 = vcmp.eq.s32.totalorder %v121, %v140
    %v142 = vsel %vm141, 1, 0
    %v143 = vcvt.s32.f32 %v142
    %v144 = vmul.f32 %v123, %v143
    %145 = vadd.xlane.f32.xlu0 %v144
    %v146 = vpop.xlane.xlu0 %145
    %v147 = vlog2.pop %v130
    %v148 = vmul.f32 %v147, 0.6931472
    %v149 = vadd.f32 %v125, %v148
    %v150 = vsub.f32 %v146, %v149
    %s151 = smul.u32 0, 8
    %v152 = vlaneseq
    %v153 = vshrl.u32 %v152, 7
    %v154 = vstv %s151
    %v155 = vadd.s32 %v154, %v153
    %vm156 = vcmp.lt.s32.totalorder %v155, 8
    %v157 = vsel %vm156, %v150, 0.0
    %vm158 = vcmask 7168
    %v159 = vsel %vm158, %v157, 0.0
    %160 = vadd.xlane.f32.xlu0 %v159
    %v161 = vpop.xlane.xlu0 %160
    %v162 = vrot.slane %v161, 4
    %v163 = vadd.f32 %v161, %v162
    %v164 = vrot.slane %v163, 2
    %v165 = vadd.f32 %v163, %v164
    %v166 = vrot.slane %v165, 1
    %v167 = vadd.f32 %v165, %v166
    %s168 = vtos %v167
    %s169 = ssub.f32 0.0, %s168
    %s170 = scalar_lea.smem [#allocation7], 0
    %171 = sst [smem:[%s170]] %s169
    // Predicated region
    $region18: #{tpu_custom_call.1} parent=1 // pred_check
      _
    $region19: #{tpu_custom_call.1} parent=1 // pred_check_branch
      %173 = sbr.rel (0) target = $region21
    $region20: #{tpu_custom_call.1} parent=1 // pred_region
      %s175 = ssub.s32 128, 128
      %176 = vsyncadd [#allocation4], %s175
      %s178 = sshll.u32 [#allocation6], 4
      %s179 = int_to_ptr.vmem [resolvable:$true] %s178
      %181 = dma.vmem_to_hbm [thread:$0]  %s179, 128, %s3, [#allocation4]
    $region21: #{tpu_custom_call.1} parent=1 // pred_fallthru
      _
    // Predicated region
    $region22: #{tpu_custom_call.1} parent=1 // pred_check
      _
    $region23: #{tpu_custom_call.1} parent=1 // pred_check_branch
      %183 = sbr.rel (0) target = $region25
    $region24: #{tpu_custom_call.1} parent=1 // pred_region
      %s185 = ssub.s32 16, 16
      %186 = vsyncadd [#allocation5], %s185
      %189 = dma.smem_to_hbm [#allocation7], 16, %s4, [#allocation5]
    $region25: #{tpu_custom_call.1} parent=1 // pred_fallthru
      _
    // Predicated region
    $region26: #{tpu_custom_call.1} parent=1 // pred_check
      _
    $region27: #{tpu_custom_call.1} parent=1 // pred_check_branch
      %191 = sbr.rel (0) target = $region29
    $region28: #{tpu_custom_call.1} parent=1 // pred_region
      %192 = dma.done [#allocation4], 128
    $region29: #{tpu_custom_call.1} parent=1 // pred_fallthru
      _
    // Predicated region
    $region30: #{tpu_custom_call.1} parent=1 // pred_check
      _
    $region31: #{tpu_custom_call.1} parent=1 // pred_check_branch
      %194 = sbr.rel (0) target = $region33
    $region32: #{tpu_custom_call.1} parent=1 // pred_region
      %195 = dma.done [#allocation5], 16
    $region33: #{tpu_custom_call.1} parent=1 // pred_fallthru
      _
    %196 = sfence
    %197 = vsyncpa [#allocation3], 1
    %198 = vsyncpa [#allocation4], 1
    %199 = vsyncpa [#allocation5], 1

// kernel: tpu_custom_call.1
$region0: #{tpu_custom_call.1}
  #allocation0 [shape = 'u32[]', space=smem, size = 0x4, offset = 0x4, fixed_abs, tag = 'smem constant byte address 0x4 - core index']
  #allocation1 [shape = 'u32[144,128]{1,0:T(1,128)}', space=vmem, size = 0x12000, scoped, tag = 'internal scratch']
  %s0 = inlined_call_operand.vmem [shape: f32[8,32], index: 0, kind: input, shape index: {}]
  %s1 = inlined_call_operand.hbm [shape: f32[32,128], index: 1, kind: input, shape index: {}]
  %s2 = inlined_call_operand.vmem [shape: s32[8,1], index: 2, kind: input, shape index: {}]
  %s3 = inlined_call_operand.hbm [shape: f32[8,128], index: 3, kind: output, shape index: {0}]
  %s4 = inlined_call_operand.hbm [shape: f32[1,1], index: 4, kind: output, shape index: {1}]
  %5 = xla_tuple %s3, %s4
  %s6 = sld [smem:[#allocation0]]
  $region34: #{tpu_custom_call.1} parent=0
    _
  %s8 = ssub.s32 1, %s6
  %s9 = scalar_select 0, %s8, %s6
  $region1: #{tpu_custom_call.1} parent=0
    #allocation2 [shape = 'u8[16384]{0}', space=vmem, size = 0x4000, scoped, tag = 'input window, operand 1, single buffered']
    #allocation3 [shape = 's32[1]{0}', space=sflag, size = 0x4, scoped, tag = 'scoped memory for tpu_custom_call.1']
    #allocation4 [shape = 's32[1]{0}', space=sflag, size = 0x4, scoped, tag = 'scoped memory for tpu_custom_call.1']
    #allocation5 [shape = 's32[1]{0}', space=sflag, size = 0x4, scoped, tag = 'scoped memory for tpu_custom_call.1']
    #allocation6 [shape = 'u8[4096]{0}', space=vmem, size = 0x1000, scoped, tag = 'output window, operand 0, single buffered']
    #allocation7 [shape = 'u8[512]{0}', space=smem, size = 0x200, scoped, tag = 'output window, operand 1, single buffered']
    %10 = vsyncpa [#allocation3], 0
    %11 = vsyncpa [#allocation4], 0
    %12 = vsyncpa [#allocation5], 0
    // Predicated region
    $region2: #{tpu_custom_call.1} parent=1 // pred_check
      _
    $region3: #{tpu_custom_call.1} parent=1 // pred_check_branch
      %14 = sbr.rel (0) target = $region5
    $region4: #{tpu_custom_call.1} parent=1 // pred_region
      _
    $region5: #{tpu_custom_call.1} parent=1 // pred_fallthru
      _
    // Predicated region
    $region6: #{tpu_custom_call.1} parent=1 // pred_check
      _
    $region7: #{tpu_custom_call.1} parent=1 // pred_check_branch
      %16 = sbr.rel (0) target = $region9
    $region8: #{tpu_custom_call.1} parent=1 // pred_region
      %s18 = ssub.s32 512, 512
      %19 = vsyncadd [#allocation3], %s18
      %s20 = sshll.u32 [#allocation2], 4
      %s21 = int_to_ptr.vmem [resolvable:$true] %s20
      %26 = dma.hbm_to_vmem [thread:$0]  %s1, 512, %s21, [#allocation3], 128, 128, 8
    $region9: #{tpu_custom_call.1} parent=1 // pred_fallthru
      _
    // Predicated region
    $region10: #{tpu_custom_call.1} parent=1 // pred_check
      _
    $region11: #{tpu_custom_call.1} parent=1 // pred_check_branch
      %28 = sbr.rel (0) target = $region13
    $region12: #{tpu_custom_call.1} parent=1 // pred_region
      _
    $region13: #{tpu_custom_call.1} parent=1 // pred_fallthru
      _
    // Predicated region
    $region14: #{tpu_custom_call.1} parent=1 // pred_check
      _
    $region15: #{tpu_custom_call.1} parent=1 // pred_check_branch
      %30 = sbr.rel (0) target = $region17
    $region16: #{tpu_custom_call.1} parent=1 // pred_region
      %31 = dma.done [#allocation3], 512
    $region17: #{tpu_custom_call.1} parent=1 // pred_fallthru
      _
    %v32 = vld [vmem:[%s0] sm:$0xff]
    %v33 = vld [vmem:[#allocation2] sm:$0xff]
    %v34 = vld [vmem:[#allocation2 + $0x8] sm:$0xff]
    %v35 = vld [vmem:[#allocation2 + $0x10] sm:$0xff]
    %v36 = vld [vmem:[#allocation2 + $0x18] sm:$0xff]
    %v37 = vmul.f32 %v32, %v32
    %vm38 = vcmask 261120
    %v39 = vsel %vm38, %v37, 0.0
    %40 = vadd.xlane.f32.xlu0 %v39
    %v41 = vpop.xlane.xlu0 %40
    %v42 = vmax.f32 %v41, 1e-24
    %v43 = vrsqrt.pop %v42
    %v44 = vmul.f32 %v32, %v43
    %v46 = vsel %vm38, %v44, 0
    %48 = vmatprep.subr.mxu0 0.0
    %49 = vmatpush1.msra.mxu0 %v33
    %50 = vmatprep.subr.mxu0 0.0
    %51 = vmatpush1.msra.mxu0 %v34
    %52 = vmatprep.subr.mxu0 0.0
    %53 = vmatpush1.msra.mxu0 %v35
    %54 = vmatprep.subr.mxu0 0.0
    %55 = vmatpush1.msra.mxu0 %v36
    %56 = vmatprep.subr.mxu0 0.0
    %57 = vmatpush1.msra.mxu0 0.0
    %58 = vmatprep.subr.mxu0 0.0
    %59 = vmatpush1.msra.mxu0 0.0
    %60 = vmatprep.subr.mxu0 0.0
    %61 = vmatpush1.msra.mxu0 0.0
    %62 = vmatprep.subr.mxu0 0.0
    %63 = vmatpush1.msra.mxu0 0.0
    %64 = vmatprep.subr.mxu0 0.0
    %65 = vmatpush1.msra.mxu0 0.0
    %66 = vmatprep.subr.mxu0 0.0
    %67 = vmatpush1.msra.mxu0 0.0
    %68 = vmatprep.subr.mxu0 0.0
    %69 = vmatpush1.msra.mxu0 0.0
    %70 = vmatprep.subr.mxu0 0.0
    %71 = vmatpush1.msra.mxu0 0.0
    %72 = vmatprep.subr.mxu0 0.0
    %73 = vmatpush1.msra.mxu0 0.0
    %74 = vmatprep.subr.mxu0 0.0
    %75 = vmatpush1.msra.mxu0 0.0
    %76 = vmatprep.subr.mxu0 0.0
    %77 = vmatpush1.msra.mxu0 0.0
    %78 = vmatprep.subr.mxu0 0.0
    %79 = vmatpush1.msra.mxu0 0.0
    %80 = vmatprep.subr.mxu0 0.0
    %81 = vmatpush1.msra.mxu0 0.0
    %82 = vmatprep.subr.mxu0 0.0
    %83 = vmatpush1.msra.mxu0 0.0
    %84 = vmatprep.subr.mxu0 0.0
    %85 = vmatpush1.msra.mxu0 0.0
    %86 = vmatprep.subr.mxu0 0.0
    %87 = vmatpush1.msra.mxu0 0.0
    %88 = vmatprep.subr.mxu0 0.0
    %89 = vmatpush1.msra.mxu0 0.0
    %90 = vmatprep.subr.mxu0 0.0
    %91 = vmatpush1.msra.mxu0 0.0
    %92 = vmatprep.subr.mxu0 0.0
    %93 = vmatpush1.msra.mxu0 0.0
    %94 = vmatprep.subr.mxu0 0.0
    %95 = vmatpush1.msra.mxu0 0.0
    %96 = vmatprep.subr.mxu0 0.0
    %97 = vmatpush1.msra.mxu0 0.0
    %98 = vmatprep.subr.mxu0 0.0
    %99 = vmatpush1.msra.mxu0 0.0
    %100 = vmatprep.subr.mxu0 0.0
    %101 = vmatpush1.msra.mxu0 0.0
    %102 = vmatprep.subr.mxu0 0.0
    %103 = vmatpush1.msra.mxu0 0.0
    %104 = vmatprep.subr.mxu0 0.0
    %105 = vmatpush1.msra.mxu0 0.0
    %106 = vmatprep.subr.mxu0 0.0
    %107 = vmatpush1.msra.mxu0 0.0
    %108 = vmatprep.subr.mxu0 0.0
    %109 = vmatpush1.msra.mxu0 0.0
    %110 = vmatprep.subr.mxu0 0.0
    %111 = vmatpush1.msra.mxu0 0.0
    %112 = vmatprep.mubr.f32.mxu0 0.0
    %113 = vmatmul.mubr.f32.gmra.mrb[0].mxu0 %v46
    %v114 = vpop.f32.mrb[0].mxu0
    %v115 = vadd.f32 0.0, %v114
    %v116 = vpop.f32.mrb[0].mxu0
    %117 = vdwg.mxu0
    %v118 = vmax.f32 %v115, -1.0
    %v119 = vmin.f32 %v118, 1.0
    %v120 = vlaneseq
    %v121 = vand.u32 %v120, 127
    %vm122 = vcmp.lt.s32.totalorder %v121, 10
    %v123 = vsel %vm122, %v119, -1e+30
    %124 = vmax.xlane.f32.xlu0 %v123
    %v125 = vpop.xlane.xlu0 %124
    %v126 = vsub.f32 %v123, %v125
    %v127 = vmul.f32 %v126, 1.442695
    %v128 = vpow.pop %v127
    %129 = vadd.xlane.f32.xlu0 %v128
    %v130 = vpop.xlane.xlu0 %129
    %v131 = vmul.f32 %v128, %v128
    %132 = vadd.xlane.f32.xlu0 %v131
    %v133 = vpop.xlane.xlu0 %132
    %v134 = vrsqrt.pop %v133
    %v135 = vmul.f32 %v128, %v134
    %136 = vst [vmem:[#allocation6] sm:$0xff] %v135
    %v137 = vld [vmem:[%s2] sm:$0xff]
    %138 = vset.pattern.permute.xlu0 0
    %139 = vperm.xlu0 %138, %v137
    %v140 = vpop.permute.xlu0 %139
    %vm141 = vcmp.eq.s32.totalorder %v121, %v140
    %v142 = vsel %vm141, 1, 0
    %v143 = vcvt.s32.f32 %v142
    %v144 = vmul.f32 %v123, %v143
    %145 = vadd.xlane.f32.xlu0 %v144
    %v146 = vpop.xlane.xlu0 %145
    %v147 = vlog2.pop %v130
    %v148 = vmul.f32 %v147, 0.6931472
    %v149 = vadd.f32 %v125, %v148
    %v150 = vsub.f32 %v146, %v149
    %s151 = smul.u32 0, 8
    %v152 = vlaneseq
    %v153 = vshrl.u32 %v152, 7
    %v154 = vstv %s151
    %v155 = vadd.s32 %v154, %v153
    %vm156 = vcmp.lt.s32.totalorder %v155, 8
    %v157 = vsel %vm156, %v150, 0.0
    %vm158 = vcmask 7168
    %v159 = vsel %vm158, %v157, 0.0
    %160 = vadd.xlane.f32.xlu0 %v159
    %v161 = vpop.xlane.xlu0 %160
    %v162 = vrot.slane %v161, 4
    %v163 = vadd.f32 %v161, %v162
    %v164 = vrot.slane %v163, 2
    %v165 = vadd.f32 %v163, %v164
    %v166 = vrot.slane %v165, 1
    %v167 = vadd.f32 %v165, %v166
    %s168 = vtos %v167
    %s169 = ssub.f32 0.0, %s168
    %s170 = scalar_lea.smem [#allocation7], 0
    %171 = sst [smem:[%s170]] %s169
    // Predicated region
    $region18: #{tpu_custom_call.1} parent=1 // pred_check
      _
    $region19: #{tpu_custom_call.1} parent=1 // pred_check_branch
      %173 = sbr.rel (0) target = $region21
    $region20: #{tpu_custom_call.1} parent=1 // pred_region
      %s175 = ssub.s32 128, 128
      %176 = vsyncadd [#allocation4], %s175
      %s178 = sshll.u32 [#allocation6], 4
      %s179 = int_to_ptr.vmem [resolvable:$true] %s178
      %181 = dma.vmem_to_hbm [thread:$0]  %s179, 128, %s3, [#allocation4]
    $region21: #{tpu_custom_call.1} parent=1 // pred_fallthru
      _
    // Predicated region
    $region22: #{tpu_custom_call.1} parent=1 // pred_check
      _
    $region23: #{tpu_custom_call.1} parent=1 // pred_check_branch
      %183 = sbr.rel (0) target = $region25
    $region24: #{tpu_custom_call.1} parent=1 // pred_region
      %s185 = ssub.s32 16, 16
      %186 = vsyncadd [#allocation5], %s185
      %189 = dma.smem_to_hbm [#allocation7], 16, %s4, [#allocation5]
    $region25: #{tpu_custom_call.1} parent=1 // pred_fallthru
      _
    // Predicated region
    $region26: #{tpu_custom_call.1} parent=1 // pred_check
      _
    $region27: #{tpu_custom_call.1} parent=1 // pred_check_branch
      %191 = sbr.rel (0) target = $region29
    $region28: #{tpu_custom_call.1} parent=1 // pred_region
      %192 = dma.done [#allocation4], 128
    $region29: #{tpu_custom_call.1} parent=1 // pred_fallthru
      _
    // Predicated region
    $region30: #{tpu_custom_call.1} parent=1 // pred_check
      _
    $region31: #{tpu_custom_call.1} parent=1 // pred_check_branch
      %194 = sbr.rel (0) target = $region33
    $region32: #{tpu_custom_call.1} parent=1 // pred_region
      %195 = dma.done [#allocation5], 16
    $region33: #{tpu_custom_call.1} parent=1 // pred_fallthru
      _
    %196 = sfence
    %197 = vsyncpa [#allocation3], 1
    %198 = vsyncpa [#allocation4], 1
    %199 = vsyncpa [#allocation5], 1

</llo_original>
